<compile_context>
chip_gen: v7x
topology: tpu7x:2x2x1
jax: 0.10.0
libtpu: 0.0.40
codegen_flags: <defaults>
</compile_context>

<pallas_src>
import functools

import jax
import jax.numpy as jnp
from jax.experimental import pallas as pl
from jax.experimental.pallas import tpu as pltpu


def som_forward_kernel(x_ref, w_ref, wterm_ref, mind_ref, bmu_ref, *,
                       matmul_dtype=None):
    """Per batch-tile:
         dist2[n, m] = ||x[n, :] - weight[:, m] + eps||^2   (eps = 1e-6, as in
                       torch.nn.PairwiseDistance, via the expanded identity)
         mind[n]     = sqrt(min_m dist2[n, m])
         bmu[n]      = argmin_m dist2[n, m]   (first minimal index, torch
                       tie-breaking)
    """
    x = x_ref[...]              # (TILE_N, D) f32
    w = w_ref[...]              # (D, M)      f32  (native module layout)
    w_term = wterm_ref[...]     # (1, M)      f32  = ||w||^2 - 2*eps*sum(w) + D*eps^2
    eps = jnp.float32(1e-6)

    # Cross term on the MXU.  Optionally run the matmul in bf16 (full-rate MXU
    # on v5e/v6e) while keeping f32 accumulation and f32 norm terms.
    if matmul_dtype is not None:
        cross = jnp.dot(x.astype(matmul_dtype), w.astype(matmul_dtype),
                        preferred_element_type=jnp.float32)      # (TILE_N, M)
    else:
        cross = jnp.dot(x, w, preferred_element_type=jnp.float32)

    # Per-row terms (lane-axis reduces over D, cheap).
    x_term = (jnp.sum(x * x, axis=-1, keepdims=True)
              + 2.0 * eps * jnp.sum(x, axis=-1, keepdims=True))  # (TILE_N, 1)

    # Squared distances, clamped at 0 to avoid NaN from rounding.
    dist2 = jnp.maximum(x_term + w_term - 2.0 * cross, 0.0)      # (TILE_N, M)

    min_d2 = jnp.min(dist2, axis=-1, keepdims=True)              # (TILE_N, 1)
    mind_ref[...] = jnp.sqrt(min_d2)                             # sqrt after min

    # First-minimal-index argmin (matches torch.min tie-breaking).
    m = dist2.shape[-1]
    idx = jax.lax.broadcasted_iota(jnp.int32, dist2.shape, 1)    # (TILE_N, M)
    masked = jnp.where(dist2 <= min_d2, idx, jnp.int32(m))
    bmu_ref[...] = jnp.min(masked, axis=-1, keepdims=True)       # (TILE_N, 1) int32


def som_forward(x, weight, location, *, tile_n=None, matmul_dtype=None):
    """Pallas equivalent of SOM.forward.

    Args:
      x:        (N, D) float32 input batch (already flattened).
      weight:   (D, M) float32 SOM weights (native module layout).
      location: (M, 2) float32 neuron grid coordinates.
      tile_n:   batch tile size (defaults to min(N, 256)).
      matmul_dtype: optional dtype (e.g. jnp.bfloat16) for the MXU cross-term.
    Returns:
      (loss, mdn_location): scalar loss (sum of per-sample min distances / N)
      and mdn_location of shape (N, 1, 2), matching the PyTorch semantics.
    """
    n, d = x.shape
    d_w, m = weight.shape
    assert d == d_w, "feature dims of x and weight must match"
    eps = 1e-6

    # Tiny (1, M) per-neuron constants, folded once:
    #   ||w_m||^2 - 2*eps*sum_d w[d, m] + D*eps^2
    w_term = (jnp.sum(weight * weight, axis=0, keepdims=True)
              - 2.0 * eps * jnp.sum(weight, axis=0, keepdims=True)
              + jnp.float32(d) * eps * eps).astype(jnp.float32)

    if tile_n is None:
        tile_n = n if n <= 256 else 256
    grid = (pl.cdiv(n, tile_n),)

    kernel = functools.partial(som_forward_kernel, matmul_dtype=matmul_dtype)

    min_d, bmu_idx = pl.pallas_call(
        kernel,
        out_shape=(
            jax.ShapeDtypeStruct((n, 1), jnp.float32),
            jax.ShapeDtypeStruct((n, 1), jnp.int32),
        ),
        grid_spec=pltpu.PrefetchScalarGridSpec(
            num_scalar_prefetch=0,
            grid=grid,
            in_specs=[
                pl.BlockSpec((tile_n, d), lambda i: (i, 0)),  # batch tile (pipelined)
                pl.BlockSpec((d, m), lambda i: (0, 0)),       # weight: VMEM-resident
                pl.BlockSpec((1, m), lambda i: (0, 0)),       # per-neuron term: resident
            ],
            out_specs=(
                pl.BlockSpec((tile_n, 1), lambda i: (i, 0)),
                pl.BlockSpec((tile_n, 1), lambda i: (i, 0)),
            ),
        ),
        compiler_params=pltpu.CompilerParams(
            dimension_semantics=("parallel",)),
    )(x, weight, w_term)

    loss = jnp.sum(min_d) / n
    mdn_location = jnp.take(location, bmu_idx[:, 0], axis=0)[:, None, :]
    return loss, mdn_location


def gen_location(neuron_size):
    side = int(neuron_size ** 0.5)
    return jnp.asarray(
        [(float(xx), float(yy)) for xx in range(side) for yy in range(side)],
        dtype=jnp.float32,
    )


def som_forward_reference(x, weight, location):
    """Plain-JAX reference mirroring the PyTorch forward (for sanity check)."""
    n = x.shape[0]
    eps = 1e-6
    diff = x[:, :, None] - weight[None, :, :] + eps       # (N, D, M)
    dist = jnp.sqrt(jnp.sum(diff * diff, axis=1))         # (N, M)
    min_d = jnp.min(dist, axis=1)
    argmin = jnp.argmin(dist, axis=1)
    loss = jnp.sum(min_d) / n
    return loss, location[argmin][:, None, :]


if __name__ == "__main__":
    # Small deterministic setup consistent with the module:
    #   input_size (D) = 32, neuron_size (M) = 16 (4x4 grid), batch N = 8.
    N, D, M = 8, 32, 16

    key = jax.random.PRNGKey(0)
    k_w, k_x = jax.random.split(key)
    weight = jax.random.normal(k_w, (D, M), dtype=jnp.float32)   # torch.randn(D, M)
    location = gen_location(M)                                   # (M, 2)
    x = jax.random.normal(k_x, (N, D), dtype=jnp.float32)

    loss, mdn_location = som_forward(x, weight, location)
    loss = jax.block_until_ready(loss)
    mdn_location = jax.block_until_ready(mdn_location)

    # Sanity check against the plain-JAX reference.
    ref_loss, ref_loc = som_forward_reference(x, weight, location)
    assert mdn_location.shape == (N, 1, 2)
    assert jnp.allclose(loss, ref_loss, rtol=1e-4, atol=1e-4), (loss, ref_loss)
    assert jnp.allclose(mdn_location, ref_loc)

    print("KERNEL_OK")
</pallas_src>

<mosaic_0001>
module attributes {stable_mosaic.version = 11 : i64} {
  func.func @som_forward_kernel(%arg0: i32, %arg1: memref<8x32xf32, #tpu.memory_space<vmem>>, %arg2: memref<32x16xf32, #tpu.memory_space<vmem>>, %arg3: memref<1x16xf32, #tpu.memory_space<vmem>>, %arg4: memref<8x1xf32, #tpu.memory_space<vmem>>, %arg5: memref<8x1xi32, #tpu.memory_space<vmem>>) attributes {dimension_semantics = [#tpu.dimension_semantics<parallel>], iteration_bounds = array<i64: 1>, scalar_prefetch = 0 : i64, scratch_operands = 0 : i64, tpu.core_type = #tpu.core_type<tc>, window_params = [{transform_indices = @transform_0, window_bounds = array<i64: 8, 32>}, {pipeline_mode = #tpu.pipeline_mode<synchronous>, transform_indices = @transform_1, window_bounds = array<i64: 32, 16>}, {pipeline_mode = #tpu.pipeline_mode<synchronous>, transform_indices = @transform_2, window_bounds = array<i64: 1, 16>}, {transform_indices = @transform_3, window_bounds = array<i64: 8, 1>}, {transform_indices = @transform_4, window_bounds = array<i64: 8, 1>}]} {
    %c0 = arith.constant 0 : index
    %c0_0 = arith.constant 0 : index
    %0 = vector.load %arg1[%c0, %c0_0] : memref<8x32xf32, #tpu.memory_space<vmem>>, vector<8x32xf32>
    %c0_1 = arith.constant 0 : index
    %c0_2 = arith.constant 0 : index
    %1 = vector.load %arg2[%c0_1, %c0_2] : memref<32x16xf32, #tpu.memory_space<vmem>>, vector<32x16xf32>
    %c0_3 = arith.constant 0 : index
    %c0_4 = arith.constant 0 : index
    %2 = vector.load %arg3[%c0_3, %c0_4] : memref<1x16xf32, #tpu.memory_space<vmem>>, vector<1x16xf32>
    %cst = arith.constant dense<0.000000e+00> : vector<8x16xf32>
    %3 = tpu.matmul %0, %1, %cst {dimension_numbers = #tpu.dot_dimension_numbers<[1], [0], [0], [1], [0, 0, 1, 1], [], []>} : vector<8x32xf32>, vector<32x16xf32>, vector<8x16xf32> -> vector<8x16xf32>
    %4 = arith.mulf %0, %0 : vector<8x32xf32>
    %cst_5 = arith.constant dense<0.000000e+00> : vector<8xf32>
    %5 = vector.multi_reduction <add>, %4, %cst_5 [1] : vector<8x32xf32> to vector<8xf32>
    %6 = vector.shape_cast %5 : vector<8xf32> to vector<8x1xf32>
    %cst_6 = arith.constant 2.000000e+00 : f32
    %cst_7 = arith.constant 9.99999997E-7 : f32
    %7 = arith.mulf %cst_6, %cst_7 : f32
    %cst_8 = arith.constant dense<0.000000e+00> : vector<8xf32>
    %8 = vector.multi_reduction <add>, %0, %cst_8 [1] : vector<8x32xf32> to vector<8xf32>
    %9 = vector.shape_cast %8 : vector<8xf32> to vector<8x1xf32>
    %10 = vector.broadcast %7 : f32 to vector<8x1xf32>
    %11 = arith.mulf %10, %9 : vector<8x1xf32>
    %12 = arith.addf %6, %11 : vector<8x1xf32>
    %13 = vector.broadcast %12 : vector<8x1xf32> to vector<8x16xf32>
    %14 = vector.broadcast %2 : vector<1x16xf32> to vector<8x16xf32>
    %15 = arith.addf %13, %14 : vector<8x16xf32>
    %cst_9 = arith.constant 2.000000e+00 : f32
    %16 = vector.broadcast %cst_9 : f32 to vector<8x16xf32>
    %17 = arith.mulf %16, %3 : vector<8x16xf32>
    %18 = arith.subf %15, %17 : vector<8x16xf32>
    %cst_10 = arith.constant 0.000000e+00 : f32
    %19 = vector.broadcast %cst_10 : f32 to vector<8x16xf32>
    %20 = arith.maximumf %18, %19 : vector<8x16xf32>
    %cst_11 = arith.constant dense<0x7F800000> : vector<8xf32>
    %21 = vector.multi_reduction <minimumf>, %20, %cst_11 [1] : vector<8x16xf32> to vector<8xf32>
    %22 = vector.shape_cast %21 : vector<8xf32> to vector<8x1xf32>
    %23 = math.sqrt %22 : vector<8x1xf32>
    %c0_12 = arith.constant 0 : index
    %c0_13 = arith.constant 0 : index
    %24 = vector.load %arg4[%c0_12, %c0_13] : memref<8x1xf32, #tpu.memory_space<vmem>>, vector<8x1xf32>
    tpu.vector_store %arg4[%c0_12, %c0_13], %23 {strides = array<i32>} : memref<8x1xf32, #tpu.memory_space<vmem>>, vector<8x1xf32>,
    %25 = tpu.iota {dimensions = array<i32: 1>} : vector<8x16xi32>
    %26 = vector.broadcast %22 : vector<8x1xf32> to vector<8x16xf32>
    %27 = arith.cmpf ole, %20, %26 : vector<8x16xf32>
    %c16_i32 = arith.constant 16 : i32
    %28 = vector.broadcast %c16_i32 : i32 to vector<8x16xi32>
    %29 = arith.select %27, %25, %28 : vector<8x16xi1>, vector<8x16xi32>
    %cst_14 = arith.constant dense<2147483647> : vector<8xi32>
    %30 = vector.multi_reduction <minsi>, %29, %cst_14 [1] : vector<8x16xi32> to vector<8xi32>
    %31 = vector.shape_cast %30 : vector<8xi32> to vector<8x1xi32>
    %c0_15 = arith.constant 0 : index
    %c0_16 = arith.constant 0 : index
    %32 = vector.load %arg5[%c0_15, %c0_16] : memref<8x1xi32, #tpu.memory_space<vmem>>, vector<8x1xi32>
    tpu.vector_store %arg5[%c0_15, %c0_16], %31 {strides = array<i32>} : memref<8x1xi32, #tpu.memory_space<vmem>>, vector<8x1xi32>,
    return
  }
  func.func @transform_0(%arg0: i32) -> (i32, i32) {
    %c0_i32 = arith.constant 0 : i32
    %c0_i32_0 = arith.constant 0 : i32
    return %arg0, %c0_i32 : i32, i32
  }
  func.func @transform_1(%arg0: i32) -> (i32, i32) {
    %c0_i32 = arith.constant 0 : i32
    %c0_i32_0 = arith.constant 0 : i32
    %c0_i32_1 = arith.constant 0 : i32
    return %c0_i32, %c0_i32_0 : i32, i32
  }
  func.func @transform_2(%arg0: i32) -> (i32, i32) {
    %c0_i32 = arith.constant 0 : i32
    %c0_i32_0 = arith.constant 0 : i32
    %c0_i32_1 = arith.constant 0 : i32
    return %c0_i32, %c0_i32_0 : i32, i32
  }
  func.func @transform_3(%arg0: i32) -> (i32, i32) {
    %c0_i32 = arith.constant 0 : i32
    %c0_i32_0 = arith.constant 0 : i32
    return %arg0, %c0_i32 : i32, i32
  }
  func.func @transform_4(%arg0: i32) -> (i32, i32) {
    %c0_i32 = arith.constant 0 : i32
    %c0_i32_0 = arith.constant 0 : i32
    return %arg0, %c0_i32 : i32, i32
  }
}

</mosaic_0001>

<llo_original>
// kernel: tpu_custom_call.1
$region0: #{tpu_custom_call.1}
  #allocation0 [shape = 'u32[]', space=smem, size = 0x4, offset = 0x4, fixed_abs, tag = 'smem constant byte address 0x4 - core index']
  #allocation1 [shape = 'u32[144,128]{1,0:T(1,128)}', space=vmem, size = 0x12000, scoped, tag = 'internal scratch']
  %s0 = inlined_call_operand.vmem [shape: f32[8,32], index: 0, kind: input, shape index: {}]
  %s1 = inlined_call_operand.vmem [shape: f32[32,16], index: 1, kind: input, shape index: {}]
  %s2 = inlined_call_operand.vmem [shape: f32[1,16], index: 2, kind: input, shape index: {}]
  %s3 = inlined_call_operand.vmem [shape: f32[8,1], index: 3, kind: output, shape index: {0}]
  %s4 = inlined_call_operand.vmem [shape: s32[8,1], index: 4, kind: output, shape index: {1}]
  %5 = xla_tuple %s3, %s4
  %s6 = sld [smem:[#allocation0]]
  $region30: #{tpu_custom_call.1} parent=0
    _
  %s8 = ssub.s32 1, %s6
  %s9 = scalar_select 0, %s8, %s6
  // Predicated region
  $region2: #{tpu_custom_call.1} parent=0 // pred_check
    _
  $region3: #{tpu_custom_call.1} parent=0 // pred_check_branch
    %11 = sbr.rel (0) target = $region5
  $region4: #{tpu_custom_call.1} parent=0 // pred_region
    _
  $region5: #{tpu_custom_call.1} parent=0 // pred_fallthru
    _
  // Predicated region
  $region6: #{tpu_custom_call.1} parent=0 // pred_check
    _
  $region7: #{tpu_custom_call.1} parent=0 // pred_check_branch
    %13 = sbr.rel (0) target = $region9
  $region8: #{tpu_custom_call.1} parent=0 // pred_region
    _
  $region9: #{tpu_custom_call.1} parent=0 // pred_fallthru
    _
  // Predicated region
  $region10: #{tpu_custom_call.1} parent=0 // pred_check
    _
  $region11: #{tpu_custom_call.1} parent=0 // pred_check_branch
    %15 = sbr.rel (0) target = $region13
  $region12: #{tpu_custom_call.1} parent=0 // pred_region
    _
  $region13: #{tpu_custom_call.1} parent=0 // pred_fallthru
    _
  %v16 = vld [vmem:[%s0] sm:$0xff]
  %v17 = vld [vmem:[%s1] sm:$0xff]
  %v18 = vld [vmem:[%s1 + $0x8] sm:$0xff]
  %v19 = vld [vmem:[%s1 + $0x10] sm:$0xff]
  %v20 = vld [vmem:[%s1 + $0x18] sm:$0xff]
  %v21 = vld [vmem:[%s2] sm:$0x1]
  %vm22 = vcmask 261120
  %v24 = vsel %vm22, %v16, 0
  %26 = vmatprep.subr.mxu0 0.0
  %27 = vmatpush1.msra.mxu0 %v17
  %28 = vmatprep.subr.mxu0 0.0
  %29 = vmatpush1.msra.mxu0 %v18
  %30 = vmatprep.subr.mxu0 0.0
  %31 = vmatpush1.msra.mxu0 %v19
  %32 = vmatprep.subr.mxu0 0.0
  %33 = vmatpush1.msra.mxu0 %v20
  %34 = vmatprep.subr.mxu0 0.0
  %35 = vmatpush1.msra.mxu0 0.0
  %36 = vmatprep.subr.mxu0 0.0
  %37 = vmatpush1.msra.mxu0 0.0
  %38 = vmatprep.subr.mxu0 0.0
  %39 = vmatpush1.msra.mxu0 0.0
  %40 = vmatprep.subr.mxu0 0.0
  %41 = vmatpush1.msra.mxu0 0.0
  %42 = vmatprep.subr.mxu0 0.0
  %43 = vmatpush1.msra.mxu0 0.0
  %44 = vmatprep.subr.mxu0 0.0
  %45 = vmatpush1.msra.mxu0 0.0
  %46 = vmatprep.subr.mxu0 0.0
  %47 = vmatpush1.msra.mxu0 0.0
  %48 = vmatprep.subr.mxu0 0.0
  %49 = vmatpush1.msra.mxu0 0.0
  %50 = vmatprep.subr.mxu0 0.0
  %51 = vmatpush1.msra.mxu0 0.0
  %52 = vmatprep.subr.mxu0 0.0
  %53 = vmatpush1.msra.mxu0 0.0
  %54 = vmatprep.subr.mxu0 0.0
  %55 = vmatpush1.msra.mxu0 0.0
  %56 = vmatprep.subr.mxu0 0.0
  %57 = vmatpush1.msra.mxu0 0.0
  %58 = vmatprep.subr.mxu0 0.0
  %59 = vmatpush1.msra.mxu0 0.0
  %60 = vmatprep.subr.mxu0 0.0
  %61 = vmatpush1.msra.mxu0 0.0
  %62 = vmatprep.subr.mxu0 0.0
  %63 = vmatpush1.msra.mxu0 0.0
  %64 = vmatprep.subr.mxu0 0.0
  %65 = vmatpush1.msra.mxu0 0.0
  %66 = vmatprep.subr.mxu0 0.0
  %67 = vmatpush1.msra.mxu0 0.0
  %68 = vmatprep.subr.mxu0 0.0
  %69 = vmatpush1.msra.mxu0 0.0
  %70 = vmatprep.subr.mxu0 0.0
  %71 = vmatpush1.msra.mxu0 0.0
  %72 = vmatprep.subr.mxu0 0.0
  %73 = vmatpush1.msra.mxu0 0.0
  %74 = vmatprep.subr.mxu0 0.0
  %75 = vmatpush1.msra.mxu0 0.0
  %76 = vmatprep.subr.mxu0 0.0
  %77 = vmatpush1.msra.mxu0 0.0
  %78 = vmatprep.subr.mxu0 0.0
  %79 = vmatpush1.msra.mxu0 0.0
  %80 = vmatprep.subr.mxu0 0.0
  %81 = vmatpush1.msra.mxu0 0.0
  %82 = vmatprep.subr.mxu0 0.0
  %83 = vmatpush1.msra.mxu0 0.0
  %84 = vmatprep.subr.mxu0 0.0
  %85 = vmatpush1.msra.mxu0 0.0
  %86 = vmatprep.subr.mxu0 0.0
  %87 = vmatpush1.msra.mxu0 0.0
  %88 = vmatprep.subr.mxu0 0.0
  %89 = vmatpush1.msra.mxu0 0.0
  %90 = vmatprep.mubr.f32.mxu0 0.0
  %91 = vmatmul.mubr.f32.gmra.mrb[0].mxu0 %v24
  %v92 = vpop.f32.mrb[0].mxu0
  %v93 = vadd.f32 0.0, %v92
  %v94 = vpop.f32.mrb[0].mxu0
  %95 = vdwg.mxu0
  %v96 = vmul.f32 %v16, %v16
  %v97 = vsel %vm22, %v96, 0.0
  %98 = vadd.xlane.f32.xlu0 %v97
  %v99 = vpop.xlane.xlu0 %98
  %v100 = vsel %vm22, %v16, 0.0
  %101 = vadd.xlane.f32.xlu0 %v100
  %v102 = vpop.xlane.xlu0 %101
  %v103 = vmul.f32 %v102, 2e-06
  %v104 = vadd.f32 %v99, %v103
  %v106 = vlaneseq
  %v107 = vshrl.u32 %v106, 7
  %v108 = vsub.s32 0, %v107
  %v109 = vrot.slane %v21, %v108
  %v111 = vadd.f32 %v104, %v109
  %v112 = vmul.f32 %v93, 2.0
  %v113 = vsub.f32 %v111, %v112
  %v114 = vmax.f32 %v113, 0.0
  %vm115 = vcmask 130048
  %v116 = vsel %vm115, %v114, inf
  %117 = vmin.xlane.f32.xlu0 %v116
  %v118 = vpop.xlane.xlu0 %117
  %v119 = vrsqrt.pop %v118
  %v120 = vmul.f32 %v118, %v119
  %vm121 = vcmp.eq.f32.partialorder %v118, inf
  %v122 = vsel %vm121, %v118, %v120
  %vm123 = vcmp.eq.f32.partialorder %v118, 0.0
  %v124 = vand.u32 %v118, 2147483648
  %v125 = vsel %vm123, %v124, %v122
  %vm126 = vcmask 7168
  %127 = vst.msk [vmem:[%s3] sm:$0xff] %vm126, %v125
  %v128 = vlaneseq
  %v129 = vand.u32 %v128, 127
  %vm130 = vcmp.le.f32.partialorder %v114, %v118
  %v131 = vsel %vm130, %v129, 16
  %v132 = vsel %vm115, %v131, 2147483647
  %v133 = vand.u32 %v132, 65535
  %v134 = vshra.s32 %v132, 16
  %v135 = vcvt.s32.f32 %v133
  %v136 = vcvt.s32.f32 %v134
  %137 = vmin.xlane.f32.xlu0 %v136
  %v138 = vpop.xlane.xlu0 %137
  %vm139 = vcmp.eq.f32.partialorder %v136, %v138
  %v140 = vsel %vm139, %v135, inf
  %141 = vmin.xlane.f32.xlu0 %v140
  %v142 = vpop.xlane.xlu0 %141
  %v143 = vcvt.f32.s32 %v142
  %v144 = vcvt.f32.s32 %v138
  %v145 = vshll.u32 %v144, 16
  %v146 = vadd.s32 %v145, %v143
  %147 = vst.msk [vmem:[%s4] sm:$0xff] %vm126, %v146
  // Predicated region
  $region14: #{tpu_custom_call.1} parent=0 // pred_check
    _
  $region15: #{tpu_custom_call.1} parent=0 // pred_check_branch
    %149 = sbr.rel (0) target = $region17
  $region16: #{tpu_custom_call.1} parent=0 // pred_region
    _
  $region17: #{tpu_custom_call.1} parent=0 // pred_fallthru
    _
  // Predicated region
  $region18: #{tpu_custom_call.1} parent=0 // pred_check
    _
  $region19: #{tpu_custom_call.1} parent=0 // pred_check_branch
    %151 = sbr.rel (0) target = $region21
  $region20: #{tpu_custom_call.1} parent=0 // pred_region
    _
  $region21: #{tpu_custom_call.1} parent=0 // pred_fallthru
    _
  // Predicated region
  $region22: #{tpu_custom_call.1} parent=0 // pred_check
    _
  $region23: #{tpu_custom_call.1} parent=0 // pred_check_branch
    %153 = sbr.rel (0) target = $region25
  $region24: #{tpu_custom_call.1} parent=0 // pred_region
    _
  $region25: #{tpu_custom_call.1} parent=0 // pred_fallthru
    _
  // Predicated region
  $region26: #{tpu_custom_call.1} parent=0 // pred_check
    _
  $region27: #{tpu_custom_call.1} parent=0 // pred_check_branch
    %155 = sbr.rel (0) target = $region29
  $region28: #{tpu_custom_call.1} parent=0 // pred_region
    _
  $region29: #{tpu_custom_call.1} parent=0 // pred_fallthru
    _

</llo_original>
